<compile_context>
chip_gen: v6e
topology: v6e:2x2x1
jax: 0.10.0
libtpu: 0.0.40
codegen_flags: <defaults>
</compile_context>

<pallas_src>
import functools
import math

import jax
import jax.numpy as jnp
from jax.experimental import pallas as pl
from jax.experimental.pallas import tpu as pltpu


def _cdiv(a, b):
    return -(-a // b)


def _lcm(a, b):
    return a * b // math.gcd(a, b)


# ---------------------------------------------------------------------------
# Fused Pallas kernel: encoder -> decoder -> root residual -> mask/val fix-up
# ---------------------------------------------------------------------------

def _fused_skeleton_kernel(x_ref, we_ref, be_ref, wda_ref, maskc_ref, maskh_ref,
                           vmask_ref, beff_ref, o_ref, *, K, pad, neg_slope):
    """One grid step processes an L-lane slab (L a multiple of 128 and of T).

    x_ref    : (C, L)         input, x_ref[c, w*T + t] = x[window w, c, t]
    we_ref   : (H, K*C)       encoder weights, column index = k*C + c
    be_ref   : (H, 1)         encoder bias
    wda_ref  : (C, K*H + C)   decoder weights (col = k*H + h) + C root-injection cols
    maskc_ref: (K*C, L)       encoder 'same'-padding validity mask (0/1 f32)
    maskh_ref: (K*H + C, L)   decoder validity mask (trailing C root rows = 1)
    vmask_ref: (C, 1)         virtual-bone mask
    beff_ref : (C, 1)         dec_bias * mask + val
    o_ref    : (C, L)         output rotation block
    """
    x = x_ref[...]                                        # (C, L)
    L = x.shape[1]

    def im2col(src, extra=None):
        # piece k holds src lane-shifted by s = k - pad (wrap-around is masked
        # off by the precomputed boundary masks, so 'same' padding needs no
        # zero-filled scratch and no masked partial stores).
        pieces = []
        for k in range(K):
            s = k - pad
            if s == 0:
                pieces.append(src)
            else:
                pieces.append(pltpu.roll(src, shift=(-s) % L, axis=1))
        if extra is not None:
            pieces.append(extra)
        return jnp.concatenate(pieces, axis=0)

    # -------- encoder: Conv1d(C -> H, K, 'same') + LeakyReLU(0.2) --------------
    xi = im2col(x) * maskc_ref[...]                       # (K*C, L)
    lat = jnp.dot(we_ref[...], xi, preferred_element_type=jnp.float32)
    lat = lat + be_ref[...]
    lat = jnp.where(lat > 0, lat, neg_slope * lat)        # (H, L)

    # -------- decoder: Conv1d(H -> C, K, 'same') + root residual ----------------
    # x is appended as the trailing C (sublane-aligned) rows; the extra weight
    # columns select row 0 (root rotation) and row C-1 (root translation /
    # velocity virtual node) so the residual rides the same MXU matmul.
    hi = im2col(lat, extra=x) * maskh_ref[...]            # (K*H + C, L)
    conv = jnp.dot(wda_ref[...], hi,
                   preferred_element_type=jnp.float32)    # (C, L)

    # -------- fix_virtual_bones: rotation * mask + val ---------------------------
    # (decoder bias folded into beff = b*mask + val in the wrapper)
    o_ref[...] = (conv * vmask_ref[...] + beff_ref[...]).astype(o_ref.dtype)


# ---------------------------------------------------------------------------
# Wrapper
# ---------------------------------------------------------------------------

@jax.jit
def skeleton_aware_generator_forward(x, params):
    """x: (B, C, T) float32. Returns rotation: (B, C, T) float32."""
    B, C, T = x.shape
    enc_w, enc_b = params["enc_w"], params["enc_b"]       # (K, H, C), (H, 1)
    dec_w, dec_b = params["dec_w"], params["dec_b"]       # (K, C, H), (C, 1)
    mask, val = params["mask"], params["val"]             # (C, 1), (C, 1)
    K, H = enc_w.shape[0], enc_w.shape[1]
    assert K % 2 == 1, "'same' conv padding assumes an odd temporal kernel size"
    pad = (K - 1) // 2

    # ---- weight / bias plumbing (pure layout, fused into the jit program) ------
    we2 = jnp.transpose(enc_w, (1, 0, 2)).reshape(H, K * C)        # (H, K*C)
    wd2 = jnp.transpose(dec_w, (1, 0, 2)).reshape(C, K * H)        # (C, K*H)
    # C extra columns inject the root rotation (output row 0) and root translation /
    # velocity virtual node (output row C-1) residuals; they multiply x itself,
    # appended as the trailing C rows of the decoder im2col.
    root_inj = (jnp.zeros((C, C), jnp.float32)
                .at[0, 0].set(1.0).at[C - 1, C - 1].set(1.0))
    wd2a = jnp.concatenate([wd2, root_inj], axis=1)                # (C, K*H + C)
    beff = dec_b * mask + val                                      # (C, 1)

    # ---- lane-dense tiling: lane axis = batch-window * T, block >= 128 lanes ---
    unit = _lcm(T, 128)                       # smallest lane block aligned to T and 128
    lanes_needed = B * T
    cap = max(1, 1024 // unit)                # up to ~1024 lanes per grid step
    blocks_per_step = max(1, min(_cdiv(lanes_needed, unit), cap))
    L = unit * blocks_per_step                # lanes per grid step
    total = _cdiv(lanes_needed, L) * L        # padded lane count (no dropped batches)
    grid = (total // L,)

    # 'same'-padding validity masks: depend only on k and lane-within-window, so they
    # repeat identically for every grid step (constant block index, tiny footprint).
    t_in = jnp.arange(L, dtype=jnp.int32) % T                      # (L,)
    rows = []
    for k in range(K):
        s = k - pad
        lo, hi = max(0, -s), T - max(0, s)
        rows.append(((t_in >= lo) & (t_in < hi)).astype(jnp.float32))
    mvec = jnp.stack(rows, axis=0)                                 # (K, L)
    maskc = jnp.repeat(mvec, C, axis=0)                            # (K*C, L)
    maskh = jnp.concatenate([jnp.repeat(mvec, H, axis=0),
                             jnp.ones((C, L), jnp.float32)], 0)    # (K*H + C, L)

    # lane-dense activation layout (C, B*T), zero-padded to `total` lanes.
    # TODO(synk): for large B keep the surrounding model in (C, B*T) layout
    # end-to-end instead of transposing through HBM here and on the way out.
    x_flat = jnp.transpose(x, (1, 0, 2)).reshape(C, lanes_needed)
    x_flat = jnp.pad(x_flat, ((0, 0), (0, total - lanes_needed)))

    out_flat = pl.pallas_call(
        functools.partial(_fused_skeleton_kernel, K=K, pad=pad, neg_slope=0.2),
        out_shape=jax.ShapeDtypeStruct((C, total), jnp.float32),
        grid=grid,
        in_specs=[
            pl.BlockSpec((C, L), lambda g: (0, g)),
            pl.BlockSpec((H, K * C), lambda g: (0, 0)),
            pl.BlockSpec((H, 1), lambda g: (0, 0)),
            pl.BlockSpec((C, K * H + C), lambda g: (0, 0)),
            pl.BlockSpec((K * C, L), lambda g: (0, 0)),
            pl.BlockSpec((K * H + C, L), lambda g: (0, 0)),
            pl.BlockSpec((C, 1), lambda g: (0, 0)),
            pl.BlockSpec((C, 1), lambda g: (0, 0)),
        ],
        out_specs=pl.BlockSpec((C, L), lambda g: (0, g)),
        compiler_params=pltpu.CompilerParams(dimension_semantics=("parallel",)),
    )(x_flat, we2, enc_b, wd2a, maskc, maskh, mask, beff)

    out_flat = out_flat[:, :lanes_needed]                          # drop pad lanes
    return jnp.transpose(out_flat.reshape(C, B, T), (1, 0, 2))


# ---------------------------------------------------------------------------
# Pure-JAX reference (for correctness check)
# ---------------------------------------------------------------------------

def _conv1d_ref(x, w, b, pad):
    K = w.shape[0]
    T = x.shape[-1]
    xp = jnp.pad(x, ((0, 0), (0, 0), (pad, pad)))
    acc = jnp.zeros((x.shape[0], w.shape[1], T), jnp.float32)
    for k in range(K):
        acc += jnp.einsum("oc,bct->bot", w[k], xp[:, :, k:k + T])
    return acc + b[None]


def _reference_forward(x, params):
    K = params["enc_w"].shape[0]
    pad = (K - 1) // 2
    h = _conv1d_ref(x, params["enc_w"], params["enc_b"], pad)
    h = jnp.where(h > 0, h, 0.2 * h)
    out = _conv1d_ref(h, params["dec_w"], params["dec_b"], pad)
    out = out.at[:, 0, :].add(x[:, 0, :])        # root rotation residual
    out = out.at[:, -1, :].add(x[:, -1, :])      # root translation residual
    out = out * params["mask"][None] + params["val"][None]
    return out


# ---------------------------------------------------------------------------
# Main
# ---------------------------------------------------------------------------

if __name__ == "__main__":
    # TODO(synk): the real encoder/decoder are external nn.Modules (skeleton-pooling
    # topology, multi-layer); here they are single skeletal temporal convolutions
    # with deterministically-initialized synthetic weights.
    B, C, T = 2, 8, 16     # batch, skeleton channels (incl. root + velocity node), window
    H, K = 16, 3           # hidden channels, temporal kernel size

    key = jax.random.PRNGKey(0)
    k_x, k_ew, k_eb, k_dw, k_db, k_m, k_v = jax.random.split(key, 7)

    x = jax.random.normal(k_x, (B, C, T), jnp.float32)
    params = {
        "enc_w": 0.1 * jax.random.normal(k_ew, (K, H, C), jnp.float32),
        "enc_b": 0.01 * jax.random.normal(k_eb, (H, 1), jnp.float32),
        "dec_w": 0.1 * jax.random.normal(k_dw, (K, C, H), jnp.float32),
        "dec_b": 0.01 * jax.random.normal(k_db, (C, 1), jnp.float32),
        # virtual-bone mask (1 = keep, 0 = fixed) and fixed values
        "mask": (jax.random.uniform(k_m, (C, 1)) > 0.25).astype(jnp.float32),
        "val": 0.5 * jax.random.normal(k_v, (C, 1), jnp.float32),
    }

    out = skeleton_aware_generator_forward(x, params)
    out = jax.block_until_ready(out)

    ref = _reference_forward(x, params)
    assert out.shape == (B, C, T)
    err = jnp.max(jnp.abs(out - ref))
    assert jnp.allclose(out, ref, atol=1e-4, rtol=1e-4), f"max err {err}"

    print("KERNEL_OK")
</pallas_src>

<mosaic_0001>
module attributes {stable_mosaic.version = 11 : i64} {
  func.func @_fused_skeleton_kernel(%arg0: i32, %arg1: memref<8x128xf32, #tpu.memory_space<vmem>>, %arg2: memref<16x24xf32, #tpu.memory_space<vmem>>, %arg3: memref<16x1xf32, #tpu.memory_space<vmem>>, %arg4: memref<8x56xf32, #tpu.memory_space<vmem>>, %arg5: memref<24x128xf32, #tpu.memory_space<vmem>>, %arg6: memref<56x128xf32, #tpu.memory_space<vmem>>, %arg7: memref<8x1xf32, #tpu.memory_space<vmem>>, %arg8: memref<8x1xf32, #tpu.memory_space<vmem>>, %arg9: memref<8x128xf32, #tpu.memory_space<vmem>>) attributes {dimension_semantics = [#tpu.dimension_semantics<parallel>], iteration_bounds = array<i64: 1>, scalar_prefetch = 0 : i64, scratch_operands = 0 : i64, tpu.core_type = #tpu.core_type<tc>, window_params = [{transform_indices = @transform_0, window_bounds = array<i64: 8, 128>}, {pipeline_mode = #tpu.pipeline_mode<synchronous>, transform_indices = @transform_1, window_bounds = array<i64: 16, 24>}, {pipeline_mode = #tpu.pipeline_mode<synchronous>, transform_indices = @transform_2, window_bounds = array<i64: 16, 1>}, {pipeline_mode = #tpu.pipeline_mode<synchronous>, transform_indices = @transform_3, window_bounds = array<i64: 8, 56>}, {pipeline_mode = #tpu.pipeline_mode<synchronous>, transform_indices = @transform_4, window_bounds = array<i64: 24, 128>}, {pipeline_mode = #tpu.pipeline_mode<synchronous>, transform_indices = @transform_5, window_bounds = array<i64: 56, 128>}, {pipeline_mode = #tpu.pipeline_mode<synchronous>, transform_indices = @transform_6, window_bounds = array<i64: 8, 1>}, {pipeline_mode = #tpu.pipeline_mode<synchronous>, transform_indices = @transform_7, window_bounds = array<i64: 8, 1>}, {transform_indices = @transform_8, window_bounds = array<i64: 8, 128>}]} {
    %c0 = arith.constant 0 : index
    %c0_0 = arith.constant 0 : index
    %0 = vector.load %arg1[%c0, %c0_0] : memref<8x128xf32, #tpu.memory_space<vmem>>, vector<8x128xf32>
    %c1_i32 = arith.constant 1 : i32
    %1 = tpu.dynamic_rotate %0 by %c1_i32 dim 1 : vector<8x128xf32>, i32 -> vector<8x128xf32>
    %c127_i32 = arith.constant 127 : i32
    %2 = tpu.dynamic_rotate %0 by %c127_i32 dim 1 : vector<8x128xf32>, i32 -> vector<8x128xf32>
    %3 = tpu.concatenate %1, %0, %2 in 0 : vector<8x128xf32>, vector<8x128xf32>, vector<8x128xf32> -> vector<24x128xf32>
    %c0_1 = arith.constant 0 : index
    %c0_2 = arith.constant 0 : index
    %4 = vector.load %arg5[%c0_1, %c0_2] : memref<24x128xf32, #tpu.memory_space<vmem>>, vector<24x128xf32>
    %5 = arith.mulf %3, %4 : vector<24x128xf32>
    %c0_3 = arith.constant 0 : index
    %c0_4 = arith.constant 0 : index
    %6 = vector.load %arg2[%c0_3, %c0_4] : memref<16x24xf32, #tpu.memory_space<vmem>>, vector<16x24xf32>
    %cst = arith.constant dense<0.000000e+00> : vector<16x128xf32>
    %7 = tpu.matmul %6, %5, %cst {dimension_numbers = #tpu.dot_dimension_numbers<[1], [0], [0], [1], [0, 0, 1, 1], [], []>} : vector<16x24xf32>, vector<24x128xf32>, vector<16x128xf32> -> vector<16x128xf32>
    %c0_5 = arith.constant 0 : index
    %c0_6 = arith.constant 0 : index
    %8 = vector.load %arg3[%c0_5, %c0_6] : memref<16x1xf32, #tpu.memory_space<vmem>>, vector<16x1xf32>
    %9 = vector.broadcast %8 : vector<16x1xf32> to vector<16x128xf32>
    %10 = arith.addf %7, %9 : vector<16x128xf32>
    %cst_7 = arith.constant 0.000000e+00 : f32
    %11 = vector.broadcast %cst_7 : f32 to vector<16x128xf32>
    %12 = arith.cmpf ogt, %10, %11 : vector<16x128xf32>
    %cst_8 = arith.constant 2.000000e-01 : f32
    %13 = vector.broadcast %cst_8 : f32 to vector<16x128xf32>
    %14 = arith.mulf %13, %10 : vector<16x128xf32>
    %15 = arith.select %12, %10, %14 : vector<16x128xi1>, vector<16x128xf32>
    %c1_i32_9 = arith.constant 1 : i32
    %16 = tpu.dynamic_rotate %15 by %c1_i32_9 dim 1 : vector<16x128xf32>, i32 -> vector<16x128xf32>
    %c127_i32_10 = arith.constant 127 : i32
    %17 = tpu.dynamic_rotate %15 by %c127_i32_10 dim 1 : vector<16x128xf32>, i32 -> vector<16x128xf32>
    %18 = tpu.concatenate %16, %15, %17, %0 in 0 : vector<16x128xf32>, vector<16x128xf32>, vector<16x128xf32>, vector<8x128xf32> -> vector<56x128xf32>
    %c0_11 = arith.constant 0 : index
    %c0_12 = arith.constant 0 : index
    %19 = vector.load %arg6[%c0_11, %c0_12] : memref<56x128xf32, #tpu.memory_space<vmem>>, vector<56x128xf32>
    %20 = arith.mulf %18, %19 : vector<56x128xf32>
    %c0_13 = arith.constant 0 : index
    %c0_14 = arith.constant 0 : index
    %21 = vector.load %arg4[%c0_13, %c0_14] : memref<8x56xf32, #tpu.memory_space<vmem>>, vector<8x56xf32>
    %cst_15 = arith.constant dense<0.000000e+00> : vector<8x128xf32>
    %22 = tpu.matmul %21, %20, %cst_15 {dimension_numbers = #tpu.dot_dimension_numbers<[1], [0], [0], [1], [0, 0, 1, 1], [], []>} : vector<8x56xf32>, vector<56x128xf32>, vector<8x128xf32> -> vector<8x128xf32>
    %c0_16 = arith.constant 0 : index
    %c0_17 = arith.constant 0 : index
    %23 = vector.load %arg7[%c0_16, %c0_17] : memref<8x1xf32, #tpu.memory_space<vmem>>, vector<8x1xf32>
    %24 = vector.broadcast %23 : vector<8x1xf32> to vector<8x128xf32>
    %25 = arith.mulf %22, %24 : vector<8x128xf32>
    %c0_18 = arith.constant 0 : index
    %c0_19 = arith.constant 0 : index
    %26 = vector.load %arg8[%c0_18, %c0_19] : memref<8x1xf32, #tpu.memory_space<vmem>>, vector<8x1xf32>
    %27 = vector.broadcast %26 : vector<8x1xf32> to vector<8x128xf32>
    %28 = arith.addf %25, %27 : vector<8x128xf32>
    %c0_20 = arith.constant 0 : index
    %c0_21 = arith.constant 0 : index
    %29 = vector.load %arg9[%c0_20, %c0_21] : memref<8x128xf32, #tpu.memory_space<vmem>>, vector<8x128xf32>
    tpu.vector_store %arg9[%c0_20, %c0_21], %28 {strides = array<i32>} : memref<8x128xf32, #tpu.memory_space<vmem>>, vector<8x128xf32>,
    return
  }
  func.func @transform_0(%arg0: i32) -> (i32, i32) {
    %c0_i32 = arith.constant 0 : i32
    %c0_i32_0 = arith.constant 0 : i32
    return %c0_i32, %arg0 : i32, i32
  }
  func.func @transform_1(%arg0: i32) -> (i32, i32) {
    %c0_i32 = arith.constant 0 : i32
    %c0_i32_0 = arith.constant 0 : i32
    %c0_i32_1 = arith.constant 0 : i32
    return %c0_i32, %c0_i32_0 : i32, i32
  }
  func.func @transform_2(%arg0: i32) -> (i32, i32) {
    %c0_i32 = arith.constant 0 : i32
    %c0_i32_0 = arith.constant 0 : i32
    %c0_i32_1 = arith.constant 0 : i32
    return %c0_i32, %c0_i32_0 : i32, i32
  }
  func.func @transform_3(%arg0: i32) -> (i32, i32) {
    %c0_i32 = arith.constant 0 : i32
    %c0_i32_0 = arith.constant 0 : i32
    %c0_i32_1 = arith.constant 0 : i32
    return %c0_i32, %c0_i32_0 : i32, i32
  }
  func.func @transform_4(%arg0: i32) -> (i32, i32) {
    %c0_i32 = arith.constant 0 : i32
    %c0_i32_0 = arith.constant 0 : i32
    %c0_i32_1 = arith.constant 0 : i32
    return %c0_i32, %c0_i32_0 : i32, i32
  }
  func.func @transform_5(%arg0: i32) -> (i32, i32) {
    %c0_i32 = arith.constant 0 : i32
    %c0_i32_0 = arith.constant 0 : i32
    %c0_i32_1 = arith.constant 0 : i32
    return %c0_i32, %c0_i32_0 : i32, i32
  }
  func.func @transform_6(%arg0: i32) -> (i32, i32) {
    %c0_i32 = arith.constant 0 : i32
    %c0_i32_0 = arith.constant 0 : i32
    %c0_i32_1 = arith.constant 0 : i32
    return %c0_i32, %c0_i32_0 : i32, i32
  }
  func.func @transform_7(%arg0: i32) -> (i32, i32) {
    %c0_i32 = arith.constant 0 : i32
    %c0_i32_0 = arith.constant 0 : i32
    %c0_i32_1 = arith.constant 0 : i32
    return %c0_i32, %c0_i32_0 : i32, i32
  }
  func.func @transform_8(%arg0: i32) -> (i32, i32) {
    %c0_i32 = arith.constant 0 : i32
    %c0_i32_0 = arith.constant 0 : i32
    return %c0_i32, %arg0 : i32, i32
  }
}

</mosaic_0001>

<llo_original>
// kernel: skeleton_aware_generator_forward.1
$region0: #{skeleton_aware_generator_forward.1}
  #allocation0 [shape = 'u32[]', space=smem, size = 0x4, offset = 0x4, fixed_abs, tag = 'smem constant byte address 0x4 - core index']
  #allocation1 [shape = 'u32[144,128]{1,0:T(1,128)}', space=vmem, size = 0x12000, scoped, tag = 'internal scratch']
  %s0 = inlined_call_operand.vmem [shape: f32[8,128], index: 0, kind: input, shape index: {}]
  %s1 = inlined_call_operand.vmem [shape: f32[16,24], index: 1, kind: input, shape index: {}]
  %s2 = inlined_call_operand.vmem [shape: f32[16,1], index: 2, kind: input, shape index: {}]
  %s3 = inlined_call_operand.vmem [shape: f32[8,56], index: 3, kind: input, shape index: {}]
  %s4 = inlined_call_operand.vmem [shape: f32[24,128], index: 4, kind: input, shape index: {}]
  %s5 = inlined_call_operand.vmem [shape: f32[56,128], index: 5, kind: input, shape index: {}]
  %s6 = inlined_call_operand.vmem [shape: f32[8,1], index: 6, kind: input, shape index: {}]
  %s7 = inlined_call_operand.vmem [shape: f32[8,1], index: 7, kind: input, shape index: {}]
  %s8 = inlined_call_operand.vmem [shape: f32[8,128], index: 8, kind: output, shape index: {}]
  %s9 = sld [smem:[#allocation0]]
  $region42: #{skeleton_aware_generator_forward.1} parent=0
    _
  %s11 = ssub.s32 1, %s9
  %s12 = scalar_select 0, %s11, %s9
  // Predicated region
  $region2: #{skeleton_aware_generator_forward.1} parent=0 // pred_check
    _
  $region3: #{skeleton_aware_generator_forward.1} parent=0 // pred_check_branch
    %14 = sbr.rel (0) target = $region5
  $region4: #{skeleton_aware_generator_forward.1} parent=0 // pred_region
    _
  $region5: #{skeleton_aware_generator_forward.1} parent=0 // pred_fallthru
    _
  // Predicated region
  $region6: #{skeleton_aware_generator_forward.1} parent=0 // pred_check
    _
  $region7: #{skeleton_aware_generator_forward.1} parent=0 // pred_check_branch
    %16 = sbr.rel (0) target = $region9
  $region8: #{skeleton_aware_generator_forward.1} parent=0 // pred_region
    _
  $region9: #{skeleton_aware_generator_forward.1} parent=0 // pred_fallthru
    _
  // Predicated region
  $region10: #{skeleton_aware_generator_forward.1} parent=0 // pred_check
    _
  $region11: #{skeleton_aware_generator_forward.1} parent=0 // pred_check_branch
    %18 = sbr.rel (0) target = $region13
  $region12: #{skeleton_aware_generator_forward.1} parent=0 // pred_region
    _
  $region13: #{skeleton_aware_generator_forward.1} parent=0 // pred_fallthru
    _
  // Predicated region
  $region14: #{skeleton_aware_generator_forward.1} parent=0 // pred_check
    _
  $region15: #{skeleton_aware_generator_forward.1} parent=0 // pred_check_branch
    %20 = sbr.rel (0) target = $region17
  $region16: #{skeleton_aware_generator_forward.1} parent=0 // pred_region
    _
  $region17: #{skeleton_aware_generator_forward.1} parent=0 // pred_fallthru
    _
  // Predicated region
  $region18: #{skeleton_aware_generator_forward.1} parent=0 // pred_check
    _
  $region19: #{skeleton_aware_generator_forward.1} parent=0 // pred_check_branch
    %22 = sbr.rel (0) target = $region21
  $region20: #{skeleton_aware_generator_forward.1} parent=0 // pred_region
    _
  $region21: #{skeleton_aware_generator_forward.1} parent=0 // pred_fallthru
    _
  // Predicated region
  $region22: #{skeleton_aware_generator_forward.1} parent=0 // pred_check
    _
  $region23: #{skeleton_aware_generator_forward.1} parent=0 // pred_check_branch
    %24 = sbr.rel (0) target = $region25
  $region24: #{skeleton_aware_generator_forward.1} parent=0 // pred_region
    _
  $region25: #{skeleton_aware_generator_forward.1} parent=0 // pred_fallthru
    _
  // Predicated region
  $region26: #{skeleton_aware_generator_forward.1} parent=0 // pred_check
    _
  $region27: #{skeleton_aware_generator_forward.1} parent=0 // pred_check_branch
    %26 = sbr.rel (0) target = $region29
  $region28: #{skeleton_aware_generator_forward.1} parent=0 // pred_region
    _
  $region29: #{skeleton_aware_generator_forward.1} parent=0 // pred_fallthru
    _
  // Predicated region
  $region30: #{skeleton_aware_generator_forward.1} parent=0 // pred_check
    _
  $region31: #{skeleton_aware_generator_forward.1} parent=0 // pred_check_branch
    %28 = sbr.rel (0) target = $region33
  $region32: #{skeleton_aware_generator_forward.1} parent=0 // pred_region
    _
  $region33: #{skeleton_aware_generator_forward.1} parent=0 // pred_fallthru
    _
  %v29 = vld [vmem:[%s0] sm:$0xff]
  %30 = vrot.lane.b32.xlu0 %v29, 1
  %v31 = vpop.permute.xlu0 %30
  %32 = vrot.lane.b32.xlu0 %v29, 127
  %v33 = vpop.permute.xlu0 %32
  %v34 = vld [vmem:[%s4] sm:$0xff]
  %v35 = vld [vmem:[%s4 + $0x8] sm:$0xff]
  %v36 = vld [vmem:[%s4 + $0x10] sm:$0xff]
  %v37 = vmul.f32 %v31, %v34
  %v38 = vmul.f32 %v29, %v35
  %v39 = vmul.f32 %v33, %v36
  %v40 = vld [vmem:[%s1] sm:$0xff]
  %v41 = vld [vmem:[%s1 + $0x8] sm:$0xff]
  %v42 = vld [vmem:[%s2] sm:$0xff]
  %v43 = vld [vmem:[%s2 + $0x8] sm:$0xff]
  %45 = vset.pattern.permute.xlu0 0
  %46 = vperm.xlu0 %45, %v42
  %v47 = vpop.permute.xlu0 %46
  %50 = vset.pattern.permute.xlu0 0
  %51 = vperm.xlu0 %50, %v43
  %v52 = vpop.permute.xlu0 %51
  %vm54 = vcmask 195584
  %v56 = vsel %vm54, %v40, 0
  %v59 = vsel %vm54, %v41, 0
  %61 = vmatprep.subr.mxu0 0.0
  %62 = vmatpush1.msra.mxu0 0.0
  %63 = vmatprep.subr.mxu0 0.0
  %64 = vmatpush1.msra.mxu0 0.0
  %65 = vmatprep.subr.mxu0 0.0
  %66 = vmatpush1.msra.mxu0 0.0
  %67 = vmatprep.subr.mxu0 0.0
  %68 = vmatpush1.msra.mxu0 0.0
  %69 = vmatprep.subr.mxu0 0.0
  %70 = vmatpush1.msra.mxu0 0.0
  %71 = vmatprep.subr.mxu0 0.0
  %72 = vmatpush1.msra.mxu0 0.0
  %73 = vmatprep.subr.mxu0 0.0
  %74 = vmatpush1.msra.mxu0 0.0
  %75 = vmatprep.subr.mxu0 0.0
  %76 = vmatpush1.msra.mxu0 0.0
  %77 = vmatprep.subr.mxu0 0.0
  %78 = vmatpush1.msra.mxu0 0.0
  %79 = vmatprep.subr.mxu0 0.0
  %80 = vmatpush1.msra.mxu0 0.0
  %81 = vmatprep.subr.mxu0 0.0
  %82 = vmatpush1.msra.mxu0 0.0
  %83 = vmatprep.subr.mxu0 0.0
  %84 = vmatpush1.msra.mxu0 0.0
  %85 = vmatprep.subr.mxu0 0.0
  %86 = vmatpush1.msra.mxu0 0.0
  %87 = vmatprep.subr.mxu0 0.0
  %88 = vmatpush1.msra.mxu0 %v39
  %89 = vmatprep.subr.mxu0 0.0
  %90 = vmatpush1.msra.mxu0 %v38
  %91 = vmatprep.subr.mxu0 0.0
  %92 = vmatpush1.msra.mxu0 %v37
  %93 = vmatprep.subr.mxu0 0.0
  %94 = vmatpush2.msra.mxu0 0.0
  %95 = vmatprep.subr.mxu0 0.0
  %96 = vmatpush2.msra.mxu0 0.0
  %97 = vmatprep.subr.mxu0 0.0
  %98 = vmatpush2.msra.mxu0 0.0
  %99 = vmatprep.subr.mxu0 0.0
  %100 = vmatpush2.msra.mxu0 0.0
  %101 = vmatprep.subr.mxu0 0.0
  %102 = vmatpush2.msra.mxu0 0.0
  %103 = vmatprep.subr.mxu0 0.0
  %104 = vmatpush2.msra.mxu0 0.0
  %105 = vmatprep.subr.mxu0 0.0
  %106 = vmatpush2.msra.mxu0 0.0
  %107 = vmatprep.subr.mxu0 0.0
  %108 = vmatpush2.msra.mxu0 0.0
  %109 = vmatprep.subr.mxu0 0.0
  %110 = vmatpush2.msra.mxu0 0.0
  %111 = vmatprep.subr.mxu0 0.0
  %112 = vmatpush2.msra.mxu0 0.0
  %113 = vmatprep.subr.mxu0 0.0
  %114 = vmatpush2.msra.mxu0 0.0
  %115 = vmatprep.subr.mxu0 0.0
  %116 = vmatpush2.msra.mxu0 0.0
  %117 = vmatprep.subr.mxu0 0.0
  %118 = vmatpush2.msra.mxu0 0.0
  %119 = vmatprep.subr.mxu0 0.0
  %120 = vmatpush2.msra.mxu0 0.0
  %121 = vmatprep.subr.mxu0 0.0
  %122 = vmatpush2.msra.mxu0 0.0
  %123 = vmatprep.subr.mxu0 0.0
  %124 = vmatpush2.msra.mxu0 0.0
  %125 = vmatprep.mubr.f32.mxu0 0.0
  %126 = vmatmul.mubr.f32.gmra.mxu0 %v56
  %v127 = vpop.f32.mrf.mxu0
  %v128 = vadd.f32 %v47, %v127
  %v129 = vpop.f32.mrf.mxu0
  %130 = vmatprep.mubr.f32.mxu0 0.0
  %131 = vmatmul.mubr.f32.gmra.mxu0 %v59
  %v132 = vpop.f32.mrf.mxu0
  %v133 = vadd.f32 %v52, %v132
  %v134 = vpop.f32.mrf.mxu0
  %135 = vdwg.mxu0
  %vm136 = vcmp.gt.f32.partialorder %v128, 0.0
  %vm137 = vcmp.gt.f32.partialorder %v133, 0.0
  %v138 = vmul.f32 %v128, 0.2
  %v139 = vmul.f32 %v133, 0.2
  %v140 = vsel %vm136, %v128, %v138
  %v141 = vsel %vm137, %v133, %v139
  %142 = vrot.lane.b32.xlu0 %v140, 1
  %v143 = vpop.permute.xlu0 %142
  %144 = vrot.lane.b32.xlu0 %v141, 1
  %v145 = vpop.permute.xlu0 %144
  %146 = vrot.lane.b32.xlu0 %v140, 127
  %v147 = vpop.permute.xlu0 %146
  %148 = vrot.lane.b32.xlu0 %v141, 127
  %v149 = vpop.permute.xlu0 %148
  %v150 = vld [vmem:[%s5] sm:$0xff]
  %v151 = vld [vmem:[%s5 + $0x8] sm:$0xff]
  %v152 = vld [vmem:[%s5 + $0x10] sm:$0xff]
  %v153 = vld [vmem:[%s5 + $0x18] sm:$0xff]
  %v154 = vld [vmem:[%s5 + $0x20] sm:$0xff]
  %v155 = vld [vmem:[%s5 + $0x28] sm:$0xff]
  %v156 = vld [vmem:[%s5 + $0x30] sm:$0xff]
  %v157 = vmul.f32 %v143, %v150
  %v158 = vmul.f32 %v145, %v151
  %v159 = vmul.f32 %v140, %v152
  %v160 = vmul.f32 %v141, %v153
  %v161 = vmul.f32 %v147, %v154
  %v162 = vmul.f32 %v149, %v155
  %v163 = vmul.f32 %v29, %v156
  %v164 = vld [vmem:[%s3] sm:$0xff]
  %vm165 = vcmask 457728
  %v167 = vsel %vm165, %v164, 0
  %169 = vmatprep.subr.mxu0 0.0
  %170 = vmatpush1.msra.mxu0 0.0
  %171 = vmatprep.subr.mxu0 0.0
  %172 = vmatpush1.msra.mxu0 0.0
  %173 = vmatprep.subr.mxu0 0.0
  %174 = vmatpush1.msra.mxu0 0.0
  %175 = vmatprep.subr.mxu0 0.0
  %176 = vmatpush1.msra.mxu0 0.0
  %177 = vmatprep.subr.mxu0 0.0
  %178 = vmatpush1.msra.mxu0 0.0
  %179 = vmatprep.subr.mxu0 0.0
  %180 = vmatpush1.msra.mxu0 0.0
  %181 = vmatprep.subr.mxu0 0.0
  %182 = vmatpush1.msra.mxu0 0.0
  %183 = vmatprep.subr.mxu0 0.0
  %184 = vmatpush1.msra.mxu0 0.0
  %185 = vmatprep.subr.mxu0 0.0
  %186 = vmatpush1.msra.mxu0 0.0
  %187 = vmatprep.subr.mxu0 0.0
  %188 = vmatpush1.msra.mxu0 %v163
  %189 = vmatprep.subr.mxu0 0.0
  %190 = vmatpush1.msra.mxu0 %v162
  %191 = vmatprep.subr.mxu0 0.0
  %192 = vmatpush1.msra.mxu0 %v161
  %193 = vmatprep.subr.mxu0 0.0
  %194 = vmatpush1.msra.mxu0 %v160
  %195 = vmatprep.subr.mxu0 0.0
  %196 = vmatpush1.msra.mxu0 %v159
  %197 = vmatprep.subr.mxu0 0.0
  %198 = vmatpush1.msra.mxu0 %v158
  %199 = vmatprep.subr.mxu0 0.0
  %200 = vmatpush1.msra.mxu0 %v157
  %201 = vmatprep.subr.mxu0 0.0
  %202 = vmatpush2.msra.mxu0 0.0
  %203 = vmatprep.subr.mxu0 0.0
  %204 = vmatpush2.msra.mxu0 0.0
  %205 = vmatprep.subr.mxu0 0.0
  %206 = vmatpush2.msra.mxu0 0.0
  %207 = vmatprep.subr.mxu0 0.0
  %208 = vmatpush2.msra.mxu0 0.0
  %209 = vmatprep.subr.mxu0 0.0
  %210 = vmatpush2.msra.mxu0 0.0
  %211 = vmatprep.subr.mxu0 0.0
  %212 = vmatpush2.msra.mxu0 0.0
  %213 = vmatprep.subr.mxu0 0.0
  %214 = vmatpush2.msra.mxu0 0.0
  %215 = vmatprep.subr.mxu0 0.0
  %216 = vmatpush2.msra.mxu0 0.0
  %217 = vmatprep.subr.mxu0 0.0
  %218 = vmatpush2.msra.mxu0 0.0
  %219 = vmatprep.subr.mxu0 0.0
  %220 = vmatpush2.msra.mxu0 0.0
  %221 = vmatprep.subr.mxu0 0.0
  %222 = vmatpush2.msra.mxu0 0.0
  %223 = vmatprep.subr.mxu0 0.0
  %224 = vmatpush2.msra.mxu0 0.0
  %225 = vmatprep.subr.mxu0 0.0
  %226 = vmatpush2.msra.mxu0 0.0
  %227 = vmatprep.subr.mxu0 0.0
  %228 = vmatpush2.msra.mxu0 0.0
  %229 = vmatprep.subr.mxu0 0.0
  %230 = vmatpush2.msra.mxu0 0.0
  %231 = vmatprep.subr.mxu0 0.0
  %232 = vmatpush2.msra.mxu0 0.0
  %233 = vmatprep.mubr.f32.mxu0 0.0
  %234 = vmatmul.mubr.f32.gmra.mxu0 %v167
  %v235 = vpop.f32.mrf.mxu0
  %v236 = vadd.f32 0.0, %v235
  %v237 = vpop.f32.mrf.mxu0
  %238 = vdwg.mxu0
  %v239 = vld [vmem:[%s6] sm:$0xff]
  %241 = vset.pattern.permute.xlu0 0
  %242 = vperm.xlu0 %241, %v239
  %v243 = vpop.permute.xlu0 %242
  %v245 = vmul.f32 %v236, %v243
  %v246 = vld [vmem:[%s7] sm:$0xff]
  %248 = vset.pattern.permute.xlu0 0
  %249 = vperm.xlu0 %248, %v246
  %v250 = vpop.permute.xlu0 %249
  %v252 = vadd.f32 %v245, %v250
  %253 = vst [vmem:[%s8] sm:$0xff] %v252
  // Predicated region
  $region34: #{skeleton_aware_generator_forward.1} parent=0 // pred_check
    _
  $region35: #{skeleton_aware_generator_forward.1} parent=0 // pred_check_branch
    %255 = sbr.rel (0) target = $region37
  $region36: #{skeleton_aware_generator_forward.1} parent=0 // pred_region
    _
  $region37: #{skeleton_aware_generator_forward.1} parent=0 // pred_fallthru
    _
  // Predicated region
  $region38: #{skeleton_aware_generator_forward.1} parent=0 // pred_check
    _
  $region39: #{skeleton_aware_generator_forward.1} parent=0 // pred_check_branch
    %257 = sbr.rel (0) target = $region41
  $region40: #{skeleton_aware_generator_forward.1} parent=0 // pred_region
    _
  $region41: #{skeleton_aware_generator_forward.1} parent=0 // pred_fallthru
    _

</llo_original>
